<compile_context>
chip_gen: v7x
topology: tpu7x:2x2x1
jax: 0.10.0
libtpu: 0.0.40
codegen_flags: <defaults>
</compile_context>

<pallas_src>
import functools

import jax
import jax.numpy as jnp
from jax import lax
from jax.experimental import pallas as pl
from jax.experimental.pallas import tpu as pltpu


def _round_up(x: int, m: int) -> int:
    return ((x + m - 1) // m) * m


def sage_gcn_fused_kernel(src_ref, nbr_ref, w_ref, wrep_ref, out_ref):
    """One row tile; mean-aggregation folded into the MXU contraction."""
    # self_hidden = src @ W + nbr_flat @ ((1/K) * tile(W, (K,1)))
    #             = (src + mean_k(nbr)) @ W        (up to fp associativity)
    sh = jnp.dot(src_ref[...], w_ref[...], preferred_element_type=jnp.float32)
    sh = sh + jnp.dot(nbr_ref[...], wrep_ref[...],
                      preferred_element_type=jnp.float32)

    # y = self_hidden + dropout(relu(self_hidden)); dropout == identity here.
    # TODO(synk): training-mode dropout (p=0.5) is not modeled.
    y = sh + jnp.maximum(sh, 0.0)

    # F.normalize(y, dim=1) with eps=1e-12 on the norm (== 1e-24 on sum-sq).
    # rsqrt runs on the EUP slot; zero-padded output columns add 0 to sumsq.
    sumsq = jnp.sum(y * y, axis=1, keepdims=True)
    scale = lax.rsqrt(jnp.maximum(sumsq, 1e-24))
    out_ref[...] = (y * scale).astype(out_ref.dtype)


def sage_gcn_reduce_kernel(src_ref, nbr_ref, w_ref, out_ref, *,
                           num_neighbors: int, feat_dim: int):
    """Fallback for very large K*D*H: VPU pairwise-tree mean, single matmul."""
    K, D = num_neighbors, feat_dim
    x = nbr_ref[...]
    slabs = [x[:, k * D:(k + 1) * D].astype(jnp.float32) for k in range(K)]
    # Pairwise reduction tree bounds live ranges (no long linear add chain).
    while len(slabs) > 1:
        nxt = [slabs[i] + slabs[i + 1] for i in range(0, len(slabs) - 1, 2)]
        if len(slabs) % 2:
            nxt.append(slabs[-1])
        slabs = nxt
    neighbor_mean = slabs[0] * (1.0 / float(K))

    hidden = src_ref[...].astype(jnp.float32) + neighbor_mean
    sh = jnp.dot(hidden, w_ref[...].astype(jnp.float32),
                 preferred_element_type=jnp.float32)

    y = sh + jnp.maximum(sh, 0.0)
    sumsq = jnp.sum(y * y, axis=1, keepdims=True)
    scale = lax.rsqrt(jnp.maximum(sumsq, 1e-24))
    out_ref[...] = (y * scale).astype(out_ref.dtype)


def sage_gcn_forward(src, nbr, weight, *, block_n=None):
    """SageGCN forward (mean aggregation, 'sum' hidden update, relu,
    eval-mode dropout, L2 row-normalize) as a row-tiled Pallas TPU kernel."""
    N, D = src.shape
    _, K, _ = nbr.shape
    H = weight.shape[1]
    assert weight.shape[0] == D and nbr.shape == (N, K, D)

    out_dtype = src.dtype
    out_itemsize = jnp.dtype(out_dtype).itemsize

    # Lane-dense output: pad hidden dim to a multiple of 128 so stores are
    # unmasked full-lane vst's; the zero columns are sliced off afterwards
    # (they do not change the per-row L2 norm).
    H_pad = _round_up(H, 128)
    w_pad = weight if H_pad == H else jnp.pad(weight, ((0, 0), (0, H_pad - H)))

    # Flatten the neighbor tensor to a lane-dense 2-D slab (free: row-major
    # contiguous), so its DMA/vregs are full-lane instead of (K, D) tiles.
    nbr_flat = nbr.reshape(N, K * D)

    # Sublane-align the node axis so every row block is a multiple of 8 rows.
    N_pad = _round_up(N, 8)
    if N_pad != N:
        src = jnp.pad(src, ((0, N_pad - N), (0, 0)))
        nbr_flat = jnp.pad(nbr_flat, ((0, N_pad - N), (0, 0)))

    # Fold the mean into the MXU when the replicated weight stays small; the
    # extra contraction depth is free on an HBM-bound kernel.
    wrep_bytes = w_pad.dtype.itemsize * K * D * H_pad
    fuse = wrep_bytes <= (8 << 20)
    w_rep = None
    if fuse:
        w_rep = jnp.tile(w_pad, (K, 1)) * (1.0 / float(K))   # (K*D, H_pad)

    # ---- generation-aware tile size / VMEM budget -------------------------
    try:
        kind = jax.devices()[0].device_kind.lower()
    except Exception:
        kind = ""
    if "v7" in kind:
        data_budget = 16 << 20      # v7x: 64 MiB physical VMEM per TC
        vmem_limit = 48 << 20
        block_cap = 512
    else:
        data_budget = 32 << 20      # v5e / v6e: 128 MiB physical VMEM
        vmem_limit = 80 << 20
        block_cap = 1024

    # Grid-invariant weight footprint (budgeted conservatively as if it were
    # double-buffered, even though we request single-buffering below).
    w_rows = D + (K * D if fuse else 0)
    w_bytes = 2 * w_pad.dtype.itemsize * w_rows * H_pad

    # Per-row bytes: double-buffered src/nbr/out blocks + f32 epilogue temps
    # (self_hidden and y ~ 2*H_pad f32; fallback also holds ~2*D f32 slabs).
    per_row = 2 * (src.dtype.itemsize * D
                   + nbr_flat.dtype.itemsize * K * D
                   + out_itemsize * H_pad)
    per_row += 4 * (2 * H_pad + (0 if fuse else 2 * D))

    if block_n is None:
        avail = max(data_budget - w_bytes, 1 << 20)
        block_n = max(8, (avail // per_row // 8) * 8)
    block_n = max(8, min((block_n // 8) * 8, block_cap, N_pad))

    # Keep >= ~4 grid steps so the BlockSpec pipeline overlaps the dominant
    # neighbor DMA with the matmul/epilogue, and so "parallel" can shard the
    # row tiles across the two v7x TensorCores.
    min_steps = 4
    if N_pad >= min_steps * 8:
        block_n = min(block_n, _round_up(-(-N_pad // min_steps), 8))

    grid = (pl.cdiv(N_pad, block_n),)

    flops = 2 * N_pad * w_rows * H_pad + 4 * N_pad * H_pad
    if not fuse:
        flops += N_pad * (K + 1) * D
    bytes_accessed = (src.dtype.itemsize * N_pad * D
                      + nbr_flat.dtype.itemsize * N_pad * K * D
                      + w_pad.dtype.itemsize * w_rows * H_pad
                      + out_itemsize * N_pad * H_pad)
    cost = pl.CostEstimate(flops=flops, transcendentals=N_pad,
                           bytes_accessed=bytes_accessed)

    def build(single_buffer_weights):
        w_kw = ({"pipeline_mode": pl.Buffered(1)}
                if single_buffer_weights else {})
        if fuse:
            kernel = sage_gcn_fused_kernel
            in_specs = [
                pl.BlockSpec((block_n, D), lambda i: (i, 0)),
                pl.BlockSpec((block_n, K * D), lambda i: (i, 0)),
                pl.BlockSpec((D, H_pad), lambda i: (0, 0), **w_kw),
                pl.BlockSpec((K * D, H_pad), lambda i: (0, 0), **w_kw),
            ]
        else:
            kernel = functools.partial(sage_gcn_reduce_kernel,
                                       num_neighbors=K, feat_dim=D)
            in_specs = [
                pl.BlockSpec((block_n, D), lambda i: (i, 0)),
                pl.BlockSpec((block_n, K * D), lambda i: (i, 0)),
                pl.BlockSpec((D, H_pad), lambda i: (0, 0), **w_kw),
            ]
        return pl.pallas_call(
            kernel,
            out_shape=jax.ShapeDtypeStruct((N_pad, H_pad), out_dtype),
            grid_spec=pltpu.PrefetchScalarGridSpec(
                num_scalar_prefetch=0,
                grid=grid,
                in_specs=in_specs,
                out_specs=pl.BlockSpec((block_n, H_pad), lambda i: (i, 0)),
            ),
            compiler_params=pltpu.CompilerParams(
                dimension_semantics=("parallel",),   # row tiles shard over TCs
                vmem_limit_bytes=vmem_limit,
            ),
            cost_estimate=cost,
        )

    args = (src, nbr_flat, w_pad, w_rep) if fuse else (src, nbr_flat, w_pad)
    try:
        # Preferred: grid-invariant weights single-buffered (halves their
        # VMEM footprint -- matters most on v7x's 64 MiB VMEM).
        out_padded = build(True)(*args)
    except Exception:
        # Fallback for JAX versions where pipeline_mode=Buffered(1) is not
        # accepted: default (double-buffered) weight specs.
        out_padded = build(False)(*args)

    return out_padded[:N, :H]


def kaiming_uniform(key, shape, dtype=jnp.float32):
    # Deterministic synthetic stand-in for init.kaiming_uniform_; exact
    # distribution parity with torch is not required for the forward check.
    fan_in = shape[0]
    bound = float(jnp.sqrt(2.0) * jnp.sqrt(3.0 / fan_in))
    return jax.random.uniform(key, shape, dtype, minval=-bound, maxval=bound)


if __name__ == "__main__":
    key = jax.random.PRNGKey(0)
    k_src, k_nbr, k_w = jax.random.split(key, 3)

    N, K = 8, 4                       # nodes, sampled neighbors per node
    input_dim, hidden_dim = 16, 32

    src = jax.random.normal(k_src, (N, input_dim), dtype=jnp.float32)
    nbr = jax.random.normal(k_nbr, (N, K, input_dim), dtype=jnp.float32)
    w = kaiming_uniform(k_w, (input_dim, hidden_dim))

    out = sage_gcn_forward(src, nbr, w)
    jax.block_until_ready(out)

    # Plain-JAX reference of the PyTorch forward (dropout = identity).
    hidden_ref = src + jnp.mean(nbr, axis=1)
    sh = hidden_ref @ w
    y = sh + jnp.maximum(sh, 0.0)
    ref = y / jnp.maximum(jnp.linalg.norm(y, axis=1, keepdims=True), 1e-12)

    assert out.shape == (N, hidden_dim)
    assert jnp.allclose(out, ref, atol=1e-4, rtol=1e-4), \
        float(jnp.max(jnp.abs(out - ref)))

    print("KERNEL_OK")
</pallas_src>

<mosaic_0001>
module attributes {stable_mosaic.version = 11 : i64} {
  func.func @sage_gcn_fused_kernel(%arg0: i32, %arg1: memref<8x16xf32, #tpu.memory_space<vmem>>, %arg2: memref<8x64xf32, #tpu.memory_space<vmem>>, %arg3: memref<16x128xf32, #tpu.memory_space<vmem>>, %arg4: memref<64x128xf32, #tpu.memory_space<vmem>>, %arg5: memref<8x128xf32, #tpu.memory_space<vmem>>) attributes {dimension_semantics = [#tpu.dimension_semantics<parallel>], iteration_bounds = array<i64: 1>, scalar_prefetch = 0 : i64, scratch_operands = 0 : i64, tpu.core_type = #tpu.core_type<tc>, window_params = [{transform_indices = @transform_0, window_bounds = array<i64: 8, 16>}, {transform_indices = @transform_1, window_bounds = array<i64: 8, 64>}, {pipeline_mode = #tpu.pipeline_mode<synchronous>, transform_indices = @transform_2, window_bounds = array<i64: 16, 128>}, {pipeline_mode = #tpu.pipeline_mode<synchronous>, transform_indices = @transform_3, window_bounds = array<i64: 64, 128>}, {transform_indices = @transform_4, window_bounds = array<i64: 8, 128>}]} {
    %c0 = arith.constant 0 : index
    %c0_0 = arith.constant 0 : index
    %0 = vector.load %arg1[%c0, %c0_0] : memref<8x16xf32, #tpu.memory_space<vmem>>, vector<8x16xf32>
    %c0_1 = arith.constant 0 : index
    %c0_2 = arith.constant 0 : index
    %1 = vector.load %arg3[%c0_1, %c0_2] : memref<16x128xf32, #tpu.memory_space<vmem>>, vector<16x128xf32>
    %cst = arith.constant dense<0.000000e+00> : vector<8x128xf32>
    %2 = tpu.matmul %0, %1, %cst {dimension_numbers = #tpu.dot_dimension_numbers<[1], [0], [0], [1], [0, 0, 1, 1], [], []>} : vector<8x16xf32>, vector<16x128xf32>, vector<8x128xf32> -> vector<8x128xf32>
    %c0_3 = arith.constant 0 : index
    %c0_4 = arith.constant 0 : index
    %3 = vector.load %arg2[%c0_3, %c0_4] : memref<8x64xf32, #tpu.memory_space<vmem>>, vector<8x64xf32>
    %c0_5 = arith.constant 0 : index
    %c0_6 = arith.constant 0 : index
    %4 = vector.load %arg4[%c0_5, %c0_6] : memref<64x128xf32, #tpu.memory_space<vmem>>, vector<64x128xf32>
    %cst_7 = arith.constant dense<0.000000e+00> : vector<8x128xf32>
    %5 = tpu.matmul %3, %4, %cst_7 {dimension_numbers = #tpu.dot_dimension_numbers<[1], [0], [0], [1], [0, 0, 1, 1], [], []>} : vector<8x64xf32>, vector<64x128xf32>, vector<8x128xf32> -> vector<8x128xf32>
    %6 = arith.addf %2, %5 : vector<8x128xf32>
    %cst_8 = arith.constant 0.000000e+00 : f32
    %7 = vector.broadcast %cst_8 : f32 to vector<8x128xf32>
    %8 = arith.maximumf %6, %7 : vector<8x128xf32>
    %9 = arith.addf %6, %8 : vector<8x128xf32>
    %10 = arith.mulf %9, %9 : vector<8x128xf32>
    %cst_9 = arith.constant dense<0.000000e+00> : vector<8xf32>
    %11 = vector.multi_reduction <add>, %10, %cst_9 [1] : vector<8x128xf32> to vector<8xf32>
    %12 = vector.shape_cast %11 : vector<8xf32> to vector<8x1xf32>
    %cst_10 = arith.constant 1.000000e-24 : f32
    %13 = vector.broadcast %cst_10 : f32 to vector<8x1xf32>
    %14 = arith.maximumf %12, %13 : vector<8x1xf32>
    %15 = math.rsqrt %14 : vector<8x1xf32>
    %16 = vector.broadcast %15 : vector<8x1xf32> to vector<8x128xf32>
    %17 = arith.mulf %9, %16 : vector<8x128xf32>
    %c0_11 = arith.constant 0 : index
    %c0_12 = arith.constant 0 : index
    %18 = vector.load %arg5[%c0_11, %c0_12] : memref<8x128xf32, #tpu.memory_space<vmem>>, vector<8x128xf32>
    tpu.vector_store %arg5[%c0_11, %c0_12], %17 {strides = array<i32>} : memref<8x128xf32, #tpu.memory_space<vmem>>, vector<8x128xf32>,
    return
  }
  func.func @transform_0(%arg0: i32) -> (i32, i32) {
    %c0_i32 = arith.constant 0 : i32
    %c0_i32_0 = arith.constant 0 : i32
    return %arg0, %c0_i32 : i32, i32
  }
  func.func @transform_1(%arg0: i32) -> (i32, i32) {
    %c0_i32 = arith.constant 0 : i32
    %c0_i32_0 = arith.constant 0 : i32
    return %arg0, %c0_i32 : i32, i32
  }
  func.func @transform_2(%arg0: i32) -> (i32, i32) {
    %c0_i32 = arith.constant 0 : i32
    %c0_i32_0 = arith.constant 0 : i32
    %c0_i32_1 = arith.constant 0 : i32
    return %c0_i32, %c0_i32_0 : i32, i32
  }
  func.func @transform_3(%arg0: i32) -> (i32, i32) {
    %c0_i32 = arith.constant 0 : i32
    %c0_i32_0 = arith.constant 0 : i32
    %c0_i32_1 = arith.constant 0 : i32
    return %c0_i32, %c0_i32_0 : i32, i32
  }
  func.func @transform_4(%arg0: i32) -> (i32, i32) {
    %c0_i32 = arith.constant 0 : i32
    %c0_i32_0 = arith.constant 0 : i32
    return %arg0, %c0_i32 : i32, i32
  }
}

module attributes {stable_mosaic.version = 11 : i64} {
  func.func @sage_gcn_fused_kernel(%arg0: i32, %arg1: memref<8x16xf32, #tpu.memory_space<vmem>>, %arg2: memref<8x64xf32, #tpu.memory_space<vmem>>, %arg3: memref<16x128xf32, #tpu.memory_space<vmem>>, %arg4: memref<64x128xf32, #tpu.memory_space<vmem>>, %arg5: memref<8x128xf32, #tpu.memory_space<vmem>>) attributes {dimension_semantics = [#tpu.dimension_semantics<parallel>], iteration_bounds = array<i64: 1>, scalar_prefetch = 0 : i64, scratch_operands = 0 : i64, tpu.core_type = #tpu.core_type<tc>, window_params = [{transform_indices = @transform_0, window_bounds = array<i64: 8, 16>}, {transform_indices = @transform_1, window_bounds = array<i64: 8, 64>}, {pipeline_mode = #tpu.pipeline_mode<synchronous>, transform_indices = @transform_2, window_bounds = array<i64: 16, 128>}, {pipeline_mode = #tpu.pipeline_mode<synchronous>, transform_indices = @transform_3, window_bounds = array<i64: 64, 128>}, {transform_indices = @transform_4, window_bounds = array<i64: 8, 128>}]} {
    %c0 = arith.constant 0 : index
    %c0_0 = arith.constant 0 : index
    %0 = vector.load %arg1[%c0, %c0_0] : memref<8x16xf32, #tpu.memory_space<vmem>>, vector<8x16xf32>
    %c0_1 = arith.constant 0 : index
    %c0_2 = arith.constant 0 : index
    %1 = vector.load %arg3[%c0_1, %c0_2] : memref<16x128xf32, #tpu.memory_space<vmem>>, vector<16x128xf32>
    %cst = arith.constant dense<0.000000e+00> : vector<8x128xf32>
    %2 = tpu.matmul %0, %1, %cst {dimension_numbers = #tpu.dot_dimension_numbers<[1], [0], [0], [1], [0, 0, 1, 1], [], []>} : vector<8x16xf32>, vector<16x128xf32>, vector<8x128xf32> -> vector<8x128xf32>
    %c0_3 = arith.constant 0 : index
    %c0_4 = arith.constant 0 : index
    %3 = vector.load %arg2[%c0_3, %c0_4] : memref<8x64xf32, #tpu.memory_space<vmem>>, vector<8x64xf32>
    %c0_5 = arith.constant 0 : index
    %c0_6 = arith.constant 0 : index
    %4 = vector.load %arg4[%c0_5, %c0_6] : memref<64x128xf32, #tpu.memory_space<vmem>>, vector<64x128xf32>
    %cst_7 = arith.constant dense<0.000000e+00> : vector<8x128xf32>
    %5 = tpu.matmul %3, %4, %cst_7 {dimension_numbers = #tpu.dot_dimension_numbers<[1], [0], [0], [1], [0, 0, 1, 1], [], []>} : vector<8x64xf32>, vector<64x128xf32>, vector<8x128xf32> -> vector<8x128xf32>
    %6 = arith.addf %2, %5 : vector<8x128xf32>
    %cst_8 = arith.constant 0.000000e+00 : f32
    %7 = vector.broadcast %cst_8 : f32 to vector<8x128xf32>
    %8 = arith.maximumf %6, %7 : vector<8x128xf32>
    %9 = arith.addf %6, %8 : vector<8x128xf32>
    %10 = arith.mulf %9, %9 : vector<8x128xf32>
    %cst_9 = arith.constant dense<0.000000e+00> : vector<8xf32>
    %11 = vector.multi_reduction <add>, %10, %cst_9 [1] : vector<8x128xf32> to vector<8xf32>
    %12 = vector.shape_cast %11 : vector<8xf32> to vector<8x1xf32>
    %cst_10 = arith.constant 1.000000e-24 : f32
    %13 = vector.broadcast %cst_10 : f32 to vector<8x1xf32>
    %14 = arith.maximumf %12, %13 : vector<8x1xf32>
    %15 = math.rsqrt %14 : vector<8x1xf32>
    %16 = vector.broadcast %15 : vector<8x1xf32> to vector<8x128xf32>
    %17 = arith.mulf %9, %16 : vector<8x128xf32>
    %c0_11 = arith.constant 0 : index
    %c0_12 = arith.constant 0 : index
    %18 = vector.load %arg5[%c0_11, %c0_12] : memref<8x128xf32, #tpu.memory_space<vmem>>, vector<8x128xf32>
    tpu.vector_store %arg5[%c0_11, %c0_12], %17 {strides = array<i32>} : memref<8x128xf32, #tpu.memory_space<vmem>>, vector<8x128xf32>,
    return
  }
  func.func @transform_0(%arg0: i32) -> (i32, i32) {
    %c0_i32 = arith.constant 0 : i32
    %c0_i32_0 = arith.constant 0 : i32
    return %arg0, %c0_i32 : i32, i32
  }
  func.func @transform_1(%arg0: i32) -> (i32, i32) {
    %c0_i32 = arith.constant 0 : i32
    %c0_i32_0 = arith.constant 0 : i32
    return %arg0, %c0_i32 : i32, i32
  }
  func.func @transform_2(%arg0: i32) -> (i32, i32) {
    %c0_i32 = arith.constant 0 : i32
    %c0_i32_0 = arith.constant 0 : i32
    %c0_i32_1 = arith.constant 0 : i32
    return %c0_i32, %c0_i32_0 : i32, i32
  }
  func.func @transform_3(%arg0: i32) -> (i32, i32) {
    %c0_i32 = arith.constant 0 : i32
    %c0_i32_0 = arith.constant 0 : i32
    %c0_i32_1 = arith.constant 0 : i32
    return %c0_i32, %c0_i32_0 : i32, i32
  }
  func.func @transform_4(%arg0: i32) -> (i32, i32) {
    %c0_i32 = arith.constant 0 : i32
    %c0_i32_0 = arith.constant 0 : i32
    return %arg0, %c0_i32 : i32, i32
  }
}

</mosaic_0001>

<llo_original>
// kernel: tpu_custom_call.1
$region0: #{tpu_custom_call.1}
  #allocation0 [shape = 'u32[]', space=smem, size = 0x4, offset = 0x4, fixed_abs, tag = 'smem constant byte address 0x4 - core index']
  #allocation1 [shape = 'u32[144,128]{1,0:T(1,128)}', space=vmem, size = 0x12000, scoped, tag = 'internal scratch']
  %s0 = inlined_call_operand.hbm [shape: f32[8,16], index: 0, kind: input, shape index: {}]
  %s1 = inlined_call_operand.hbm [shape: f32[8,64], index: 1, kind: input, shape index: {}]
  %s2 = inlined_call_operand.hbm [shape: f32[16,128], index: 2, kind: input, shape index: {}]
  %s3 = inlined_call_operand.hbm [shape: f32[64,128], index: 3, kind: input, shape index: {}]
  %s4 = inlined_call_operand.hbm [shape: f32[8,128], index: 4, kind: output, shape index: {}]
  %s5 = sld [smem:[#allocation0]]
  $region42: #{tpu_custom_call.1} parent=0
    _
  %s7 = ssub.s32 1, %s5
  %s8 = scalar_select 0, %s7, %s5
  $region1: #{tpu_custom_call.1} parent=0
    #allocation2 [shape = 'u8[4096]{0}', space=vmem, size = 0x1000, scoped, tag = 'input window, operand 0, single buffered']
    #allocation3 [shape = 's32[1]{0}', space=sflag, size = 0x4, scoped, tag = 'scoped memory for tpu_custom_call.1']
    #allocation4 [shape = 's32[1]{0}', space=sflag, size = 0x4, scoped, tag = 'scoped memory for tpu_custom_call.1']
    #allocation5 [shape = 'u8[4096]{0}', space=vmem, size = 0x1000, scoped, tag = 'input window, operand 1, single buffered']
    #allocation6 [shape = 's32[1]{0}', space=sflag, size = 0x4, scoped, tag = 'scoped memory for tpu_custom_call.1']
    #allocation7 [shape = 'u8[8192]{0}', space=vmem, size = 0x2000, scoped, tag = 'input window, operand 2, single buffered']
    #allocation8 [shape = 'u8[32768]{0}', space=vmem, size = 0x8000, scoped, tag = 'input window, operand 3, single buffered']
    #allocation9 [shape = 's32[1]{0}', space=sflag, size = 0x4, scoped, tag = 'scoped memory for tpu_custom_call.1']
    #allocation10 [shape = 'u8[4096]{0}', space=vmem, size = 0x1000, scoped, tag = 'output window, operand 0, single buffered']
    %9 = vsyncpa [#allocation3], 0
    %10 = vsyncpa [#allocation6], 0
    %11 = vsyncpa [#allocation9], 0
    %12 = vsyncpa [#allocation4], 0
    // Predicated region
    $region2: #{tpu_custom_call.1} parent=1 // pred_check
      _
    $region3: #{tpu_custom_call.1} parent=1 // pred_check_branch
      %14 = sbr.rel (0) target = $region5
    $region4: #{tpu_custom_call.1} parent=1 // pred_region
      %s16 = ssub.s32 128, 128
      %17 = vsyncadd [#allocation3], %s16
      %s19 = sshll.u32 [#allocation2], 4
      %s20 = int_to_ptr.vmem [resolvable:$true] %s19
      %22 = dma.hbm_to_vmem [thread:$0]  %s0, 128, %s20, [#allocation3]
    $region5: #{tpu_custom_call.1} parent=1 // pred_fallthru
      _
    // Predicated region
    $region6: #{tpu_custom_call.1} parent=1 // pred_check
      _
    $region7: #{tpu_custom_call.1} parent=1 // pred_check_branch
      %24 = sbr.rel (0) target = $region9
    $region8: #{tpu_custom_call.1} parent=1 // pred_region
      %s26 = ssub.s32 128, 128
      %27 = vsyncadd [#allocation6], %s26
      %s29 = sshll.u32 [#allocation5], 4
      %s30 = int_to_ptr.vmem [resolvable:$true] %s29
      %32 = dma.hbm_to_vmem [thread:$0]  %s1, 128, %s30, [#allocation6]
    $region9: #{tpu_custom_call.1} parent=1 // pred_fallthru
      _
    // Predicated region
    $region10: #{tpu_custom_call.1} parent=1 // pred_check
      _
    $region11: #{tpu_custom_call.1} parent=1 // pred_check_branch
      %34 = sbr.rel (0) target = $region13
    $region12: #{tpu_custom_call.1} parent=1 // pred_region
      %s36 = ssub.s32 256, 256
      %37 = vsyncadd [#allocation6], %s36
      %s38 = sshll.u32 [#allocation7], 4
      %s39 = int_to_ptr.vmem [resolvable:$true] %s38
      %44 = dma.hbm_to_vmem [thread:$0]  %s2, 256, %s39, [#allocation6], 128, 128, 8
    $region13: #{tpu_custom_call.1} parent=1 // pred_fallthru
      _
    // Predicated region
    $region14: #{tpu_custom_call.1} parent=1 // pred_check
      _
    $region15: #{tpu_custom_call.1} parent=1 // pred_check_branch
      %46 = sbr.rel (0) target = $region17
    $region16: #{tpu_custom_call.1} parent=1 // pred_region
      %s48 = ssub.s32 1024, 1024
      %49 = vsyncadd [#allocation9], %s48
      %s50 = sshll.u32 [#allocation8], 4
      %s51 = int_to_ptr.vmem [resolvable:$true] %s50
      %56 = dma.hbm_to_vmem [thread:$0]  %s3, 1024, %s51, [#allocation9], 128, 128, 8
    $region17: #{tpu_custom_call.1} parent=1 // pred_fallthru
      _
    // Predicated region
    $region18: #{tpu_custom_call.1} parent=1 // pred_check
      _
    $region19: #{tpu_custom_call.1} parent=1 // pred_check_branch
      %58 = sbr.rel (0) target = $region21
    $region20: #{tpu_custom_call.1} parent=1 // pred_region
      %59 = dma.done [#allocation3], 128
    $region21: #{tpu_custom_call.1} parent=1 // pred_fallthru
      _
    // Predicated region
    $region22: #{tpu_custom_call.1} parent=1 // pred_check
      _
    $region23: #{tpu_custom_call.1} parent=1 // pred_check_branch
      %61 = sbr.rel (0) target = $region25
    $region24: #{tpu_custom_call.1} parent=1 // pred_region
      %62 = dma.done [#allocation6], 128
    $region25: #{tpu_custom_call.1} parent=1 // pred_fallthru
      _
    // Predicated region
    $region26: #{tpu_custom_call.1} parent=1 // pred_check
      _
    $region27: #{tpu_custom_call.1} parent=1 // pred_check_branch
      %64 = sbr.rel (0) target = $region29
    $region28: #{tpu_custom_call.1} parent=1 // pred_region
      %65 = dma.done [#allocation6], 256
    $region29: #{tpu_custom_call.1} parent=1 // pred_fallthru
      _
    // Predicated region
    $region30: #{tpu_custom_call.1} parent=1 // pred_check
      _
    $region31: #{tpu_custom_call.1} parent=1 // pred_check_branch
      %67 = sbr.rel (0) target = $region33
    $region32: #{tpu_custom_call.1} parent=1 // pred_region
      %68 = dma.done [#allocation9], 1024
    $region33: #{tpu_custom_call.1} parent=1 // pred_fallthru
      _
    %v69 = vld [vmem:[#allocation2] sm:$0xff]
    %v70 = vld [vmem:[#allocation7] sm:$0xff]
    %v71 = vld [vmem:[#allocation7 + $0x8] sm:$0xff]
    %v72 = vld [vmem:[#allocation5] sm:$0xff]
    %v73 = vld [vmem:[#allocation8] sm:$0xff]
    %v74 = vld [vmem:[#allocation8 + $0x8] sm:$0xff]
    %v75 = vld [vmem:[#allocation8 + $0x10] sm:$0xff]
    %v76 = vld [vmem:[#allocation8 + $0x18] sm:$0xff]
    %v77 = vld [vmem:[#allocation8 + $0x20] sm:$0xff]
    %v78 = vld [vmem:[#allocation8 + $0x28] sm:$0xff]
    %v79 = vld [vmem:[#allocation8 + $0x30] sm:$0xff]
    %v80 = vld [vmem:[#allocation8 + $0x38] sm:$0xff]
    %vm81 = vcmask 523264
    %v83 = vsel %vm81, %v72, 0
    %85 = vmatprep.subr.mxu0 0.0
    %86 = vmatpush1.msra.mxu0 %v73
    %87 = vmatprep.subr.mxu0 0.0
    %88 = vmatpush1.msra.mxu0 %v74
    %89 = vmatprep.subr.mxu0 0.0
    %90 = vmatpush1.msra.mxu0 %v75
    %91 = vmatprep.subr.mxu0 0.0
    %92 = vmatpush1.msra.mxu0 %v76
    %93 = vmatprep.subr.mxu0 0.0
    %94 = vmatpush1.msra.mxu0 %v77
    %95 = vmatprep.subr.mxu0 0.0
    %96 = vmatpush1.msra.mxu0 %v78
    %97 = vmatprep.subr.mxu0 0.0
    %98 = vmatpush1.msra.mxu0 %v79
    %99 = vmatprep.subr.mxu0 0.0
    %100 = vmatpush1.msra.mxu0 %v80
    %101 = vmatprep.subr.mxu0 0.0
    %102 = vmatpush1.msra.mxu0 0.0
    %103 = vmatprep.subr.mxu0 0.0
    %104 = vmatpush1.msra.mxu0 0.0
    %105 = vmatprep.subr.mxu0 0.0
    %106 = vmatpush1.msra.mxu0 0.0
    %107 = vmatprep.subr.mxu0 0.0
    %108 = vmatpush1.msra.mxu0 0.0
    %109 = vmatprep.subr.mxu0 0.0
    %110 = vmatpush1.msra.mxu0 0.0
    %111 = vmatprep.subr.mxu0 0.0
    %112 = vmatpush1.msra.mxu0 0.0
    %113 = vmatprep.subr.mxu0 0.0
    %114 = vmatpush1.msra.mxu0 0.0
    %115 = vmatprep.subr.mxu0 0.0
    %116 = vmatpush1.msra.mxu0 0.0
    %117 = vmatprep.subr.mxu0 0.0
    %118 = vmatpush1.msra.mxu0 0.0
    %119 = vmatprep.subr.mxu0 0.0
    %120 = vmatpush1.msra.mxu0 0.0
    %121 = vmatprep.subr.mxu0 0.0
    %122 = vmatpush1.msra.mxu0 0.0
    %123 = vmatprep.subr.mxu0 0.0
    %124 = vmatpush1.msra.mxu0 0.0
    %125 = vmatprep.subr.mxu0 0.0
    %126 = vmatpush1.msra.mxu0 0.0
    %127 = vmatprep.subr.mxu0 0.0
    %128 = vmatpush1.msra.mxu0 0.0
    %129 = vmatprep.subr.mxu0 0.0
    %130 = vmatpush1.msra.mxu0 0.0
    %131 = vmatprep.subr.mxu0 0.0
    %132 = vmatpush1.msra.mxu0 0.0
    %133 = vmatprep.subr.mxu0 0.0
    %134 = vmatpush1.msra.mxu0 0.0
    %135 = vmatprep.subr.mxu0 0.0
    %136 = vmatpush1.msra.mxu0 0.0
    %137 = vmatprep.subr.mxu0 0.0
    %138 = vmatpush1.msra.mxu0 0.0
    %139 = vmatprep.subr.mxu0 0.0
    %140 = vmatpush1.msra.mxu0 0.0
    %141 = vmatprep.subr.mxu0 0.0
    %142 = vmatpush1.msra.mxu0 0.0
    %143 = vmatprep.subr.mxu0 0.0
    %144 = vmatpush1.msra.mxu0 0.0
    %145 = vmatprep.subr.mxu0 0.0
    %146 = vmatpush1.msra.mxu0 0.0
    %147 = vmatprep.subr.mxu0 0.0
    %148 = vmatpush1.msra.mxu0 0.0
    %149 = vmatprep.mubr.f32.mxu0 0.0
    %150 = vmatmul.mubr.f32.gmra.mrb[0].mxu0 %v83
    %v151 = vpop.f32.mrb[0].mxu0
    %v152 = vadd.f32 0.0, %v151
    %v153 = vpop.f32.mrb[0].mxu0
    %154 = vdwg.mxu0
    %vm155 = vcmask 130048
    %v157 = vsel %vm155, %v69, 0
    %159 = vmatprep.subr.mxu0 0.0
    %160 = vmatpush1.msra.mxu0 %v70
    %161 = vmatprep.subr.mxu0 0.0
    %162 = vmatpush1.msra.mxu0 %v71
    %163 = vmatprep.subr.mxu0 0.0
    %164 = vmatpush1.msra.mxu0 0.0
    %165 = vmatprep.subr.mxu0 0.0
    %166 = vmatpush1.msra.mxu0 0.0
    %167 = vmatprep.subr.mxu0 0.0
    %168 = vmatpush1.msra.mxu0 0.0
    %169 = vmatprep.subr.mxu0 0.0
    %170 = vmatpush1.msra.mxu0 0.0
    %171 = vmatprep.subr.mxu0 0.0
    %172 = vmatpush1.msra.mxu0 0.0
    %173 = vmatprep.subr.mxu0 0.0
    %174 = vmatpush1.msra.mxu0 0.0
    %175 = vmatprep.subr.mxu0 0.0
    %176 = vmatpush1.msra.mxu0 0.0
    %177 = vmatprep.subr.mxu0 0.0
    %178 = vmatpush1.msra.mxu0 0.0
    %179 = vmatprep.subr.mxu0 0.0
    %180 = vmatpush1.msra.mxu0 0.0
    %181 = vmatprep.subr.mxu0 0.0
    %182 = vmatpush1.msra.mxu0 0.0
    %183 = vmatprep.subr.mxu0 0.0
    %184 = vmatpush1.msra.mxu0 0.0
    %185 = vmatprep.subr.mxu0 0.0
    %186 = vmatpush1.msra.mxu0 0.0
    %187 = vmatprep.subr.mxu0 0.0
    %188 = vmatpush1.msra.mxu0 0.0
    %189 = vmatprep.subr.mxu0 0.0
    %190 = vmatpush1.msra.mxu0 0.0
    %191 = vmatprep.subr.mxu0 0.0
    %192 = vmatpush1.msra.mxu0 0.0
    %193 = vmatprep.subr.mxu0 0.0
    %194 = vmatpush1.msra.mxu0 0.0
    %195 = vmatprep.subr.mxu0 0.0
    %196 = vmatpush1.msra.mxu0 0.0
    %197 = vmatprep.subr.mxu0 0.0
    %198 = vmatpush1.msra.mxu0 0.0
    %199 = vmatprep.subr.mxu0 0.0
    %200 = vmatpush1.msra.mxu0 0.0
    %201 = vmatprep.subr.mxu0 0.0
    %202 = vmatpush1.msra.mxu0 0.0
    %203 = vmatprep.subr.mxu0 0.0
    %204 = vmatpush1.msra.mxu0 0.0
    %205 = vmatprep.subr.mxu0 0.0
    %206 = vmatpush1.msra.mxu0 0.0
    %207 = vmatprep.subr.mxu0 0.0
    %208 = vmatpush1.msra.mxu0 0.0
    %209 = vmatprep.subr.mxu0 0.0
    %210 = vmatpush1.msra.mxu0 0.0
    %211 = vmatprep.subr.mxu0 0.0
    %212 = vmatpush1.msra.mxu0 0.0
    %213 = vmatprep.subr.mxu0 0.0
    %214 = vmatpush1.msra.mxu0 0.0
    %215 = vmatprep.subr.mxu0 0.0
    %216 = vmatpush1.msra.mxu0 0.0
    %217 = vmatprep.subr.mxu0 0.0
    %218 = vmatpush1.msra.mxu0 0.0
    %219 = vmatprep.subr.mxu0 0.0
    %220 = vmatpush1.msra.mxu0 0.0
    %221 = vmatprep.subr.mxu0 0.0
    %222 = vmatpush1.msra.mxu0 0.0
    %223 = vmatprep.mubr.f32.mxu0 0.0
    %224 = vmatmul.mubr.f32.gmra.mrb[0].mxu0 %v157
    %v225 = vpop.f32.mrb[0].mxu0
    %v226 = vadd.f32 %v152, %v225
    %v227 = vpop.f32.mrb[0].mxu0
    %228 = vdwg.mxu0
    %v229 = vmax.f32 %v226, 0.0
    %v230 = vadd.f32 %v226, %v229
    %v231 = vmul.f32 %v230, %v230
    %232 = vadd.xlane.f32.xlu0 %v231
    %v233 = vpop.xlane.xlu0 %232
    %v234 = vmax.f32 %v233, 1e-24
    %v235 = vrsqrt.pop %v234
    %v236 = vmul.f32 %v230, %v235
    %237 = vst [vmem:[#allocation10] sm:$0xff] %v236
    // Predicated region
    $region34: #{tpu_custom_call.1} parent=1 // pred_check
      _
    $region35: #{tpu_custom_call.1} parent=1 // pred_check_branch
      %239 = sbr.rel (0) target = $region37
    $region36: #{tpu_custom_call.1} parent=1 // pred_region
      %s241 = ssub.s32 128, 128
      %242 = vsyncadd [#allocation4], %s241
      %s244 = sshll.u32 [#allocation10], 4
      %s245 = int_to_ptr.vmem [resolvable:$true] %s244
      %247 = dma.vmem_to_hbm [thread:$0]  %s245, 128, %s4, [#allocation4]
    $region37: #{tpu_custom_call.1} parent=1 // pred_fallthru
      _
    // Predicated region
    $region38: #{tpu_custom_call.1} parent=1 // pred_check
      _
    $region39: #{tpu_custom_call.1} parent=1 // pred_check_branch
      %249 = sbr.rel (0) target = $region41
    $region40: #{tpu_custom_call.1} parent=1 // pred_region
      %250 = dma.done [#allocation4], 128
    $region41: #{tpu_custom_call.1} parent=1 // pred_fallthru
      _
    %251 = vsyncpa [#allocation3], 1
    %252 = vsyncpa [#allocation6], 1
    %253 = vsyncpa [#allocation9], 1
    %254 = vsyncpa [#allocation4], 1

// kernel: tpu_custom_call.1
$region0: #{tpu_custom_call.1}
  #allocation0 [shape = 'u32[]', space=smem, size = 0x4, offset = 0x4, fixed_abs, tag = 'smem constant byte address 0x4 - core index']
  #allocation1 [shape = 'u32[144,128]{1,0:T(1,128)}', space=vmem, size = 0x12000, scoped, tag = 'internal scratch']
  %s0 = inlined_call_operand.hbm [shape: f32[8,16], index: 0, kind: input, shape index: {}]
  %s1 = inlined_call_operand.hbm [shape: f32[8,64], index: 1, kind: input, shape index: {}]
  %s2 = inlined_call_operand.hbm [shape: f32[16,128], index: 2, kind: input, shape index: {}]
  %s3 = inlined_call_operand.hbm [shape: f32[64,128], index: 3, kind: input, shape index: {}]
  %s4 = inlined_call_operand.hbm [shape: f32[8,128], index: 4, kind: output, shape index: {}]
  %s5 = sld [smem:[#allocation0]]
  $region42: #{tpu_custom_call.1} parent=0
    _
  %s7 = ssub.s32 1, %s5
  %s8 = scalar_select 0, %s7, %s5
  $region1: #{tpu_custom_call.1} parent=0
    #allocation2 [shape = 'u8[4096]{0}', space=vmem, size = 0x1000, scoped, tag = 'input window, operand 0, single buffered']
    #allocation3 [shape = 's32[1]{0}', space=sflag, size = 0x4, scoped, tag = 'scoped memory for tpu_custom_call.1']
    #allocation4 [shape = 's32[1]{0}', space=sflag, size = 0x4, scoped, tag = 'scoped memory for tpu_custom_call.1']
    #allocation5 [shape = 'u8[4096]{0}', space=vmem, size = 0x1000, scoped, tag = 'input window, operand 1, single buffered']
    #allocation6 [shape = 's32[1]{0}', space=sflag, size = 0x4, scoped, tag = 'scoped memory for tpu_custom_call.1']
    #allocation7 [shape = 'u8[8192]{0}', space=vmem, size = 0x2000, scoped, tag = 'input window, operand 2, single buffered']
    #allocation8 [shape = 'u8[32768]{0}', space=vmem, size = 0x8000, scoped, tag = 'input window, operand 3, single buffered']
    #allocation9 [shape = 's32[1]{0}', space=sflag, size = 0x4, scoped, tag = 'scoped memory for tpu_custom_call.1']
    #allocation10 [shape = 'u8[4096]{0}', space=vmem, size = 0x1000, scoped, tag = 'output window, operand 0, single buffered']
    %9 = vsyncpa [#allocation3], 0
    %10 = vsyncpa [#allocation6], 0
    %11 = vsyncpa [#allocation9], 0
    %12 = vsyncpa [#allocation4], 0
    // Predicated region
    $region2: #{tpu_custom_call.1} parent=1 // pred_check
      _
    $region3: #{tpu_custom_call.1} parent=1 // pred_check_branch
      %14 = sbr.rel (0) target = $region5
    $region4: #{tpu_custom_call.1} parent=1 // pred_region
      %s16 = ssub.s32 128, 128
      %17 = vsyncadd [#allocation3], %s16
      %s19 = sshll.u32 [#allocation2], 4
      %s20 = int_to_ptr.vmem [resolvable:$true] %s19
      %22 = dma.hbm_to_vmem [thread:$0]  %s0, 128, %s20, [#allocation3]
    $region5: #{tpu_custom_call.1} parent=1 // pred_fallthru
      _
    // Predicated region
    $region6: #{tpu_custom_call.1} parent=1 // pred_check
      _
    $region7: #{tpu_custom_call.1} parent=1 // pred_check_branch
      %24 = sbr.rel (0) target = $region9
    $region8: #{tpu_custom_call.1} parent=1 // pred_region
      %s26 = ssub.s32 128, 128
      %27 = vsyncadd [#allocation6], %s26
      %s29 = sshll.u32 [#allocation5], 4
      %s30 = int_to_ptr.vmem [resolvable:$true] %s29
      %32 = dma.hbm_to_vmem [thread:$0]  %s1, 128, %s30, [#allocation6]
    $region9: #{tpu_custom_call.1} parent=1 // pred_fallthru
      _
    // Predicated region
    $region10: #{tpu_custom_call.1} parent=1 // pred_check
      _
    $region11: #{tpu_custom_call.1} parent=1 // pred_check_branch
      %34 = sbr.rel (0) target = $region13
    $region12: #{tpu_custom_call.1} parent=1 // pred_region
      %s36 = ssub.s32 256, 256
      %37 = vsyncadd [#allocation6], %s36
      %s38 = sshll.u32 [#allocation7], 4
      %s39 = int_to_ptr.vmem [resolvable:$true] %s38
      %44 = dma.hbm_to_vmem [thread:$0]  %s2, 256, %s39, [#allocation6], 128, 128, 8
    $region13: #{tpu_custom_call.1} parent=1 // pred_fallthru
      _
    // Predicated region
    $region14: #{tpu_custom_call.1} parent=1 // pred_check
      _
    $region15: #{tpu_custom_call.1} parent=1 // pred_check_branch
      %46 = sbr.rel (0) target = $region17
    $region16: #{tpu_custom_call.1} parent=1 // pred_region
      %s48 = ssub.s32 1024, 1024
      %49 = vsyncadd [#allocation9], %s48
      %s50 = sshll.u32 [#allocation8], 4
      %s51 = int_to_ptr.vmem [resolvable:$true] %s50
      %56 = dma.hbm_to_vmem [thread:$0]  %s3, 1024, %s51, [#allocation9], 128, 128, 8
    $region17: #{tpu_custom_call.1} parent=1 // pred_fallthru
      _
    // Predicated region
    $region18: #{tpu_custom_call.1} parent=1 // pred_check
      _
    $region19: #{tpu_custom_call.1} parent=1 // pred_check_branch
      %58 = sbr.rel (0) target = $region21
    $region20: #{tpu_custom_call.1} parent=1 // pred_region
      %59 = dma.done [#allocation3], 128
    $region21: #{tpu_custom_call.1} parent=1 // pred_fallthru
      _
    // Predicated region
    $region22: #{tpu_custom_call.1} parent=1 // pred_check
      _
    $region23: #{tpu_custom_call.1} parent=1 // pred_check_branch
      %61 = sbr.rel (0) target = $region25
    $region24: #{tpu_custom_call.1} parent=1 // pred_region
      %62 = dma.done [#allocation6], 128
    $region25: #{tpu_custom_call.1} parent=1 // pred_fallthru
      _
    // Predicated region
    $region26: #{tpu_custom_call.1} parent=1 // pred_check
      _
    $region27: #{tpu_custom_call.1} parent=1 // pred_check_branch
      %64 = sbr.rel (0) target = $region29
    $region28: #{tpu_custom_call.1} parent=1 // pred_region
      %65 = dma.done [#allocation6], 256
    $region29: #{tpu_custom_call.1} parent=1 // pred_fallthru
      _
    // Predicated region
    $region30: #{tpu_custom_call.1} parent=1 // pred_check
      _
    $region31: #{tpu_custom_call.1} parent=1 // pred_check_branch
      %67 = sbr.rel (0) target = $region33
    $region32: #{tpu_custom_call.1} parent=1 // pred_region
      %68 = dma.done [#allocation9], 1024
    $region33: #{tpu_custom_call.1} parent=1 // pred_fallthru
      _
    %v69 = vld [vmem:[#allocation2] sm:$0xff]
    %v70 = vld [vmem:[#allocation7] sm:$0xff]
    %v71 = vld [vmem:[#allocation7 + $0x8] sm:$0xff]
    %v72 = vld [vmem:[#allocation5] sm:$0xff]
    %v73 = vld [vmem:[#allocation8] sm:$0xff]
    %v74 = vld [vmem:[#allocation8 + $0x8] sm:$0xff]
    %v75 = vld [vmem:[#allocation8 + $0x10] sm:$0xff]
    %v76 = vld [vmem:[#allocation8 + $0x18] sm:$0xff]
    %v77 = vld [vmem:[#allocation8 + $0x20] sm:$0xff]
    %v78 = vld [vmem:[#allocation8 + $0x28] sm:$0xff]
    %v79 = vld [vmem:[#allocation8 + $0x30] sm:$0xff]
    %v80 = vld [vmem:[#allocation8 + $0x38] sm:$0xff]
    %vm81 = vcmask 523264
    %v83 = vsel %vm81, %v72, 0
    %85 = vmatprep.subr.mxu0 0.0
    %86 = vmatpush1.msra.mxu0 %v73
    %87 = vmatprep.subr.mxu0 0.0
    %88 = vmatpush1.msra.mxu0 %v74
    %89 = vmatprep.subr.mxu0 0.0
    %90 = vmatpush1.msra.mxu0 %v75
    %91 = vmatprep.subr.mxu0 0.0
    %92 = vmatpush1.msra.mxu0 %v76
    %93 = vmatprep.subr.mxu0 0.0
    %94 = vmatpush1.msra.mxu0 %v77
    %95 = vmatprep.subr.mxu0 0.0
    %96 = vmatpush1.msra.mxu0 %v78
    %97 = vmatprep.subr.mxu0 0.0
    %98 = vmatpush1.msra.mxu0 %v79
    %99 = vmatprep.subr.mxu0 0.0
    %100 = vmatpush1.msra.mxu0 %v80
    %101 = vmatprep.subr.mxu0 0.0
    %102 = vmatpush1.msra.mxu0 0.0
    %103 = vmatprep.subr.mxu0 0.0
    %104 = vmatpush1.msra.mxu0 0.0
    %105 = vmatprep.subr.mxu0 0.0
    %106 = vmatpush1.msra.mxu0 0.0
    %107 = vmatprep.subr.mxu0 0.0
    %108 = vmatpush1.msra.mxu0 0.0
    %109 = vmatprep.subr.mxu0 0.0
    %110 = vmatpush1.msra.mxu0 0.0
    %111 = vmatprep.subr.mxu0 0.0
    %112 = vmatpush1.msra.mxu0 0.0
    %113 = vmatprep.subr.mxu0 0.0
    %114 = vmatpush1.msra.mxu0 0.0
    %115 = vmatprep.subr.mxu0 0.0
    %116 = vmatpush1.msra.mxu0 0.0
    %117 = vmatprep.subr.mxu0 0.0
    %118 = vmatpush1.msra.mxu0 0.0
    %119 = vmatprep.subr.mxu0 0.0
    %120 = vmatpush1.msra.mxu0 0.0
    %121 = vmatprep.subr.mxu0 0.0
    %122 = vmatpush1.msra.mxu0 0.0
    %123 = vmatprep.subr.mxu0 0.0
    %124 = vmatpush1.msra.mxu0 0.0
    %125 = vmatprep.subr.mxu0 0.0
    %126 = vmatpush1.msra.mxu0 0.0
    %127 = vmatprep.subr.mxu0 0.0
    %128 = vmatpush1.msra.mxu0 0.0
    %129 = vmatprep.subr.mxu0 0.0
    %130 = vmatpush1.msra.mxu0 0.0
    %131 = vmatprep.subr.mxu0 0.0
    %132 = vmatpush1.msra.mxu0 0.0
    %133 = vmatprep.subr.mxu0 0.0
    %134 = vmatpush1.msra.mxu0 0.0
    %135 = vmatprep.subr.mxu0 0.0
    %136 = vmatpush1.msra.mxu0 0.0
    %137 = vmatprep.subr.mxu0 0.0
    %138 = vmatpush1.msra.mxu0 0.0
    %139 = vmatprep.subr.mxu0 0.0
    %140 = vmatpush1.msra.mxu0 0.0
    %141 = vmatprep.subr.mxu0 0.0
    %142 = vmatpush1.msra.mxu0 0.0
    %143 = vmatprep.subr.mxu0 0.0
    %144 = vmatpush1.msra.mxu0 0.0
    %145 = vmatprep.subr.mxu0 0.0
    %146 = vmatpush1.msra.mxu0 0.0
    %147 = vmatprep.subr.mxu0 0.0
    %148 = vmatpush1.msra.mxu0 0.0
    %149 = vmatprep.mubr.f32.mxu0 0.0
    %150 = vmatmul.mubr.f32.gmra.mrb[0].mxu0 %v83
    %v151 = vpop.f32.mrb[0].mxu0
    %v152 = vadd.f32 0.0, %v151
    %v153 = vpop.f32.mrb[0].mxu0
    %154 = vdwg.mxu0
    %vm155 = vcmask 130048
    %v157 = vsel %vm155, %v69, 0
    %159 = vmatprep.subr.mxu0 0.0
    %160 = vmatpush1.msra.mxu0 %v70
    %161 = vmatprep.subr.mxu0 0.0
    %162 = vmatpush1.msra.mxu0 %v71
    %163 = vmatprep.subr.mxu0 0.0
    %164 = vmatpush1.msra.mxu0 0.0
    %165 = vmatprep.subr.mxu0 0.0
    %166 = vmatpush1.msra.mxu0 0.0
    %167 = vmatprep.subr.mxu0 0.0
    %168 = vmatpush1.msra.mxu0 0.0
    %169 = vmatprep.subr.mxu0 0.0
    %170 = vmatpush1.msra.mxu0 0.0
    %171 = vmatprep.subr.mxu0 0.0
    %172 = vmatpush1.msra.mxu0 0.0
    %173 = vmatprep.subr.mxu0 0.0
    %174 = vmatpush1.msra.mxu0 0.0
    %175 = vmatprep.subr.mxu0 0.0
    %176 = vmatpush1.msra.mxu0 0.0
    %177 = vmatprep.subr.mxu0 0.0
    %178 = vmatpush1.msra.mxu0 0.0
    %179 = vmatprep.subr.mxu0 0.0
    %180 = vmatpush1.msra.mxu0 0.0
    %181 = vmatprep.subr.mxu0 0.0
    %182 = vmatpush1.msra.mxu0 0.0
    %183 = vmatprep.subr.mxu0 0.0
    %184 = vmatpush1.msra.mxu0 0.0
    %185 = vmatprep.subr.mxu0 0.0
    %186 = vmatpush1.msra.mxu0 0.0
    %187 = vmatprep.subr.mxu0 0.0
    %188 = vmatpush1.msra.mxu0 0.0
    %189 = vmatprep.subr.mxu0 0.0
    %190 = vmatpush1.msra.mxu0 0.0
    %191 = vmatprep.subr.mxu0 0.0
    %192 = vmatpush1.msra.mxu0 0.0
    %193 = vmatprep.subr.mxu0 0.0
    %194 = vmatpush1.msra.mxu0 0.0
    %195 = vmatprep.subr.mxu0 0.0
    %196 = vmatpush1.msra.mxu0 0.0
    %197 = vmatprep.subr.mxu0 0.0
    %198 = vmatpush1.msra.mxu0 0.0
    %199 = vmatprep.subr.mxu0 0.0
    %200 = vmatpush1.msra.mxu0 0.0
    %201 = vmatprep.subr.mxu0 0.0
    %202 = vmatpush1.msra.mxu0 0.0
    %203 = vmatprep.subr.mxu0 0.0
    %204 = vmatpush1.msra.mxu0 0.0
    %205 = vmatprep.subr.mxu0 0.0
    %206 = vmatpush1.msra.mxu0 0.0
    %207 = vmatprep.subr.mxu0 0.0
    %208 = vmatpush1.msra.mxu0 0.0
    %209 = vmatprep.subr.mxu0 0.0
    %210 = vmatpush1.msra.mxu0 0.0
    %211 = vmatprep.subr.mxu0 0.0
    %212 = vmatpush1.msra.mxu0 0.0
    %213 = vmatprep.subr.mxu0 0.0
    %214 = vmatpush1.msra.mxu0 0.0
    %215 = vmatprep.subr.mxu0 0.0
    %216 = vmatpush1.msra.mxu0 0.0
    %217 = vmatprep.subr.mxu0 0.0
    %218 = vmatpush1.msra.mxu0 0.0
    %219 = vmatprep.subr.mxu0 0.0
    %220 = vmatpush1.msra.mxu0 0.0
    %221 = vmatprep.subr.mxu0 0.0
    %222 = vmatpush1.msra.mxu0 0.0
    %223 = vmatprep.mubr.f32.mxu0 0.0
    %224 = vmatmul.mubr.f32.gmra.mrb[0].mxu0 %v157
    %v225 = vpop.f32.mrb[0].mxu0
    %v226 = vadd.f32 %v152, %v225
    %v227 = vpop.f32.mrb[0].mxu0
    %228 = vdwg.mxu0
    %v229 = vmax.f32 %v226, 0.0
    %v230 = vadd.f32 %v226, %v229
    %v231 = vmul.f32 %v230, %v230
    %232 = vadd.xlane.f32.xlu0 %v231
    %v233 = vpop.xlane.xlu0 %232
    %v234 = vmax.f32 %v233, 1e-24
    %v235 = vrsqrt.pop %v234
    %v236 = vmul.f32 %v230, %v235
    %237 = vst [vmem:[#allocation10] sm:$0xff] %v236
    // Predicated region
    $region34: #{tpu_custom_call.1} parent=1 // pred_check
      _
    $region35: #{tpu_custom_call.1} parent=1 // pred_check_branch
      %239 = sbr.rel (0) target = $region37
    $region36: #{tpu_custom_call.1} parent=1 // pred_region
      %s241 = ssub.s32 128, 128
      %242 = vsyncadd [#allocation4], %s241
      %s244 = sshll.u32 [#allocation10], 4
      %s245 = int_to_ptr.vmem [resolvable:$true] %s244
      %247 = dma.vmem_to_hbm [thread:$0]  %s245, 128, %s4, [#allocation4]
    $region37: #{tpu_custom_call.1} parent=1 // pred_fallthru
      _
    // Predicated region
    $region38: #{tpu_custom_call.1} parent=1 // pred_check
      _
    $region39: #{tpu_custom_call.1} parent=1 // pred_check_branch
      %249 = sbr.rel (0) target = $region41
    $region40: #{tpu_custom_call.1} parent=1 // pred_region
      %250 = dma.done [#allocation4], 128
    $region41: #{tpu_custom_call.1} parent=1 // pred_fallthru
      _
    %251 = vsyncpa [#allocation3], 1
    %252 = vsyncpa [#allocation6], 1
    %253 = vsyncpa [#allocation9], 1
    %254 = vsyncpa [#allocation4], 1

</llo_original>
